<compile_context>
chip_gen: v5e
topology: v5e:2x2
jax: 0.10.0
libtpu: 0.0.40
codegen_flags: <defaults>
</compile_context>

<pallas_src>
import jax
import jax.numpy as jnp
from jax.experimental import pallas as pl
from jax.experimental.pallas import tpu as pltpu


def _round_up(a: int, b: int) -> int:
    return (a + b - 1) // b * b


def _gin_kernel(x_ref, *refs):
    """refs = (W0, b0, W1, b1, ..., W_{L-1}, b_{L-1}, out_ref)."""
    out_ref = refs[-1]
    param_refs = refs[:-1]
    num_linear = len(param_refs) // 2

    x = x_ref[...].astype(jnp.float32)          # (TB, C)
    c = x.shape[-1]
    split = c // 2
    x0 = x[:, :split]                            # (TB, split)
    x1 = x[:, split:]                            # (TB, split)

    # --- MLP(x0): Linear -> ReLU -> ... -> Linear (unrolled at trace time) ---
    h = x0
    for li in range(num_linear):
        w = param_refs[2 * li][...]              # (d_in, d_out)
        b = param_refs[2 * li + 1][...]          # (1, d_out)
        h = jnp.dot(h, w, preferred_element_type=jnp.float32) + b
        if li < num_linear - 1:
            h = jnp.maximum(h, 0.0)              # ReLU on hidden layers only
    st = h                                       # (TB, 2*split - 1)

    # --- volume-preserving affine coupling ---
    s = 0.1 * jnp.tanh(st[:, : split - 1])       # (TB, split - 1)
    s_last = -jnp.sum(s, axis=-1, keepdims=True)  # (TB, 1): log-det == 0
    s_full = jnp.concatenate([s, s_last], axis=-1)  # (TB, split)
    t = st[:, split - 1:]                        # (TB, split)

    transformed = x1 * jnp.exp(s_full) + t       # (TB, split)

    # Single dense full-block store (lane/sublane-dense as C allows).
    y = jnp.concatenate([transformed, x0], axis=-1)
    out_ref[...] = y.astype(out_ref.dtype)


def gin_layer(x, params, *, block_rows: int = 128):
    """Pallas equivalent of GINLayer.forward.

    Args:
      x:      float array [..., in_channels], in_channels even (>= 4).
      params: list of (W, b) for each Linear layer, with W: [d_in, d_out]
              (so the layer computes h @ W + b) and b: [d_out].
              Layer dims must be: split -> hidden -> ... -> hidden -> 2*split-1.
      block_rows: batch tile size (rounded to a multiple of 8, capped at 128
                  for tiny inputs).

    Returns:
      y with the same shape/dtype as x.
    """
    c = x.shape[-1]
    assert c % 2 == 0 and c >= 4, "in_channels must be even and >= 4"
    split = c // 2
    assert params[0][0].shape[0] == split
    assert params[-1][0].shape[1] == 2 * split - 1

    orig_shape = x.shape
    x_flat = x.reshape(-1, c)
    n = x_flat.shape[0]

    # Sublane-aligned batch tile; pad the batch so every block is full.
    tb = max(8, min(block_rows, _round_up(n, 8)))
    n_pad = _round_up(n, tb)
    if n_pad != n:
        x_flat = jnp.pad(x_flat, ((0, n_pad - n), (0, 0)))

    # Flatten params; biases as (1, d) rows so every operand is 2-D.
    flat_args = [x_flat]
    in_specs = [pl.BlockSpec((tb, c), lambda i: (i, 0))]
    for w, b in params:
        b2 = jnp.asarray(b).reshape(1, -1)
        flat_args.append(jnp.asarray(w))
        flat_args.append(b2)
        # Full-array blocks with constant index_map -> VMEM-resident weights.
        in_specs.append(pl.BlockSpec(w.shape, lambda i: (0, 0)))
        in_specs.append(pl.BlockSpec(b2.shape, lambda i: (0, 0)))

    grid_spec = pltpu.PrefetchScalarGridSpec(
        num_scalar_prefetch=0,
        grid=(n_pad // tb,),
        in_specs=in_specs,
        out_specs=pl.BlockSpec((tb, c), lambda i: (i, 0)),
    )

    y_pad = pl.pallas_call(
        _gin_kernel,
        out_shape=jax.ShapeDtypeStruct((n_pad, c), x.dtype),
        grid_spec=grid_spec,
        compiler_params=pltpu.CompilerParams(
            dimension_semantics=("parallel",)),
    )(*flat_args)

    return y_pad[:n].reshape(orig_shape)


# ----------------------------- reference & demo ------------------------------

def _init_params(key, in_channels, n_layers, hidden_size):
    """Deterministic Linear params (PyTorch-style uniform init), W as [d_in, d_out]."""
    split = in_channels // 2
    dims = [split] + [hidden_size] * (n_layers - 1) + [2 * split - 1]
    params = []
    for i in range(n_layers):
        key, kw, kb = jax.random.split(key, 3)
        bound = 1.0 / (dims[i] ** 0.5)
        w = jax.random.uniform(kw, (dims[i], dims[i + 1]),
                               minval=-bound, maxval=bound, dtype=jnp.float32)
        b = jax.random.uniform(kb, (dims[i + 1],),
                               minval=-bound, maxval=bound, dtype=jnp.float32)
        params.append((w, b))
    return params


def _gin_reference(x, params):
    """Pure-JAX reference mirroring the PyTorch GINLayer.forward."""
    c = x.shape[-1]
    split = c // 2
    x0, x1 = x[..., :split], x[..., split:]
    h = x0
    for i, (w, b) in enumerate(params):
        h = h @ w + b
        if i < len(params) - 1:
            h = jax.nn.relu(h)
    s = 0.1 * jnp.tanh(h[..., : split - 1])
    s = jnp.concatenate([s, -jnp.sum(s, axis=-1, keepdims=True)], axis=-1)
    transformed = x1 * jnp.exp(s) + h[..., split - 1:]
    return jnp.concatenate([transformed, x0], axis=-1)


if __name__ == "__main__":
    # Small shapes consistent with the module (pi-VAE latent flow layer).
    batch = 16
    in_channels = 8       # even -> split_size = 4
    n_layers = 3
    hidden_size = 32

    key = jax.random.PRNGKey(0)
    k_params, k_x = jax.random.split(key)
    params = _init_params(k_params, in_channels, n_layers, hidden_size)
    x = jax.random.normal(k_x, (batch, in_channels), dtype=jnp.float32)

    y = gin_layer(x, params)
    jax.block_until_ready(y)

    y_ref = _gin_reference(x, params)
    assert y.shape == x.shape
    assert jnp.allclose(y, y_ref, rtol=1e-5, atol=1e-5), (
        f"max abs err {jnp.max(jnp.abs(y - y_ref))}")

    print("KERNEL_OK")
</pallas_src>

<mosaic_0001>
module attributes {stable_mosaic.version = 11 : i64} {
  func.func @_gin_kernel(%arg0: i32, %arg1: memref<16x8xf32, #tpu.memory_space<vmem>>, %arg2: memref<4x32xf32, #tpu.memory_space<vmem>>, %arg3: memref<1x32xf32, #tpu.memory_space<vmem>>, %arg4: memref<32x32xf32, #tpu.memory_space<vmem>>, %arg5: memref<1x32xf32, #tpu.memory_space<vmem>>, %arg6: memref<32x7xf32, #tpu.memory_space<vmem>>, %arg7: memref<1x7xf32, #tpu.memory_space<vmem>>, %arg8: memref<16x8xf32, #tpu.memory_space<vmem>>) attributes {dimension_semantics = [#tpu.dimension_semantics<parallel>], iteration_bounds = array<i64: 1>, scalar_prefetch = 0 : i64, scratch_operands = 0 : i64, tpu.core_type = #tpu.core_type<tc>, window_params = [{transform_indices = @transform_0, window_bounds = array<i64: 16, 8>}, {pipeline_mode = #tpu.pipeline_mode<synchronous>, transform_indices = @transform_1, window_bounds = array<i64: 4, 32>}, {pipeline_mode = #tpu.pipeline_mode<synchronous>, transform_indices = @transform_2, window_bounds = array<i64: 1, 32>}, {pipeline_mode = #tpu.pipeline_mode<synchronous>, transform_indices = @transform_3, window_bounds = array<i64: 32, 32>}, {pipeline_mode = #tpu.pipeline_mode<synchronous>, transform_indices = @transform_4, window_bounds = array<i64: 1, 32>}, {pipeline_mode = #tpu.pipeline_mode<synchronous>, transform_indices = @transform_5, window_bounds = array<i64: 32, 7>}, {pipeline_mode = #tpu.pipeline_mode<synchronous>, transform_indices = @transform_6, window_bounds = array<i64: 1, 7>}, {transform_indices = @transform_7, window_bounds = array<i64: 16, 8>}]} {
    %c0 = arith.constant 0 : index
    %c0_0 = arith.constant 0 : index
    %0 = vector.load %arg1[%c0, %c0_0] : memref<16x8xf32, #tpu.memory_space<vmem>>, vector<16x8xf32>
    %1 = vector.extract_strided_slice %0 {offsets = [0, 0], sizes = [16, 4], strides = [1, 1]} : vector<16x8xf32> to vector<16x4xf32>
    %2 = vector.extract_strided_slice %0 {offsets = [0, 4], sizes = [16, 4], strides = [1, 1]} : vector<16x8xf32> to vector<16x4xf32>
    %c0_1 = arith.constant 0 : index
    %c0_2 = arith.constant 0 : index
    %3 = vector.load %arg2[%c0_1, %c0_2] : memref<4x32xf32, #tpu.memory_space<vmem>>, vector<4x32xf32>
    %c0_3 = arith.constant 0 : index
    %c0_4 = arith.constant 0 : index
    %4 = vector.load %arg3[%c0_3, %c0_4] : memref<1x32xf32, #tpu.memory_space<vmem>>, vector<1x32xf32>
    %cst = arith.constant dense<0.000000e+00> : vector<16x32xf32>
    %5 = tpu.matmul %1, %3, %cst {dimension_numbers = #tpu.dot_dimension_numbers<[1], [0], [0], [1], [0, 0, 1, 1], [], []>} : vector<16x4xf32>, vector<4x32xf32>, vector<16x32xf32> -> vector<16x32xf32>
    %6 = vector.broadcast %4 : vector<1x32xf32> to vector<16x32xf32>
    %7 = arith.addf %5, %6 : vector<16x32xf32>
    %cst_5 = arith.constant 0.000000e+00 : f32
    %8 = vector.broadcast %cst_5 : f32 to vector<16x32xf32>
    %9 = arith.maximumf %7, %8 : vector<16x32xf32>
    %c0_6 = arith.constant 0 : index
    %c0_7 = arith.constant 0 : index
    %10 = vector.load %arg4[%c0_6, %c0_7] : memref<32x32xf32, #tpu.memory_space<vmem>>, vector<32x32xf32>
    %c0_8 = arith.constant 0 : index
    %c0_9 = arith.constant 0 : index
    %11 = vector.load %arg5[%c0_8, %c0_9] : memref<1x32xf32, #tpu.memory_space<vmem>>, vector<1x32xf32>
    %cst_10 = arith.constant dense<0.000000e+00> : vector<16x32xf32>
    %12 = tpu.matmul %9, %10, %cst_10 {dimension_numbers = #tpu.dot_dimension_numbers<[1], [0], [0], [1], [0, 0, 1, 1], [], []>} : vector<16x32xf32>, vector<32x32xf32>, vector<16x32xf32> -> vector<16x32xf32>
    %13 = vector.broadcast %11 : vector<1x32xf32> to vector<16x32xf32>
    %14 = arith.addf %12, %13 : vector<16x32xf32>
    %cst_11 = arith.constant 0.000000e+00 : f32
    %15 = vector.broadcast %cst_11 : f32 to vector<16x32xf32>
    %16 = arith.maximumf %14, %15 : vector<16x32xf32>
    %c0_12 = arith.constant 0 : index
    %c0_13 = arith.constant 0 : index
    %17 = vector.load %arg6[%c0_12, %c0_13] : memref<32x7xf32, #tpu.memory_space<vmem>>, vector<32x7xf32>
    %c0_14 = arith.constant 0 : index
    %c0_15 = arith.constant 0 : index
    %18 = vector.load %arg7[%c0_14, %c0_15] : memref<1x7xf32, #tpu.memory_space<vmem>>, vector<1x7xf32>
    %cst_16 = arith.constant dense<0.000000e+00> : vector<16x7xf32>
    %19 = tpu.matmul %16, %17, %cst_16 {dimension_numbers = #tpu.dot_dimension_numbers<[1], [0], [0], [1], [0, 0, 1, 1], [], []>} : vector<16x32xf32>, vector<32x7xf32>, vector<16x7xf32> -> vector<16x7xf32>
    %20 = vector.broadcast %18 : vector<1x7xf32> to vector<16x7xf32>
    %21 = arith.addf %19, %20 : vector<16x7xf32>
    %22 = vector.extract_strided_slice %21 {offsets = [0, 0], sizes = [16, 3], strides = [1, 1]} : vector<16x7xf32> to vector<16x3xf32>
    %23 = math.tanh %22 : vector<16x3xf32>
    %cst_17 = arith.constant 1.000000e-01 : f32
    %24 = vector.broadcast %cst_17 : f32 to vector<16x3xf32>
    %25 = arith.mulf %24, %23 : vector<16x3xf32>
    %cst_18 = arith.constant dense<0.000000e+00> : vector<16xf32>
    %26 = vector.multi_reduction <add>, %25, %cst_18 [1] : vector<16x3xf32> to vector<16xf32>
    %27 = vector.shape_cast %26 : vector<16xf32> to vector<16x1xf32>
    %cst_19 = arith.constant 0.000000e+00 : f32
    %28 = vector.broadcast %cst_19 : f32 to vector<16x1xf32>
    %29 = arith.subf %28, %27 : vector<16x1xf32>
    %30 = tpu.concatenate %25, %29 in 1 : vector<16x3xf32>, vector<16x1xf32> -> vector<16x4xf32>
    %31 = vector.extract_strided_slice %21 {offsets = [0, 3], sizes = [16, 4], strides = [1, 1]} : vector<16x7xf32> to vector<16x4xf32>
    %32 = math.exp %30 : vector<16x4xf32>
    %33 = arith.mulf %2, %32 : vector<16x4xf32>
    %34 = arith.addf %33, %31 : vector<16x4xf32>
    %35 = tpu.concatenate %34, %1 in 1 : vector<16x4xf32>, vector<16x4xf32> -> vector<16x8xf32>
    %c0_20 = arith.constant 0 : index
    %c0_21 = arith.constant 0 : index
    %36 = vector.load %arg8[%c0_20, %c0_21] : memref<16x8xf32, #tpu.memory_space<vmem>>, vector<16x8xf32>
    tpu.vector_store %arg8[%c0_20, %c0_21], %35 {strides = array<i32>} : memref<16x8xf32, #tpu.memory_space<vmem>>, vector<16x8xf32>,
    return
  }
  func.func @transform_0(%arg0: i32) -> (i32, i32) {
    %c0_i32 = arith.constant 0 : i32
    %c0_i32_0 = arith.constant 0 : i32
    return %arg0, %c0_i32 : i32, i32
  }
  func.func @transform_1(%arg0: i32) -> (i32, i32) {
    %c0_i32 = arith.constant 0 : i32
    %c0_i32_0 = arith.constant 0 : i32
    %c0_i32_1 = arith.constant 0 : i32
    return %c0_i32, %c0_i32_0 : i32, i32
  }
  func.func @transform_2(%arg0: i32) -> (i32, i32) {
    %c0_i32 = arith.constant 0 : i32
    %c0_i32_0 = arith.constant 0 : i32
    %c0_i32_1 = arith.constant 0 : i32
    return %c0_i32, %c0_i32_0 : i32, i32
  }
  func.func @transform_3(%arg0: i32) -> (i32, i32) {
    %c0_i32 = arith.constant 0 : i32
    %c0_i32_0 = arith.constant 0 : i32
    %c0_i32_1 = arith.constant 0 : i32
    return %c0_i32, %c0_i32_0 : i32, i32
  }
  func.func @transform_4(%arg0: i32) -> (i32, i32) {
    %c0_i32 = arith.constant 0 : i32
    %c0_i32_0 = arith.constant 0 : i32
    %c0_i32_1 = arith.constant 0 : i32
    return %c0_i32, %c0_i32_0 : i32, i32
  }
  func.func @transform_5(%arg0: i32) -> (i32, i32) {
    %c0_i32 = arith.constant 0 : i32
    %c0_i32_0 = arith.constant 0 : i32
    %c0_i32_1 = arith.constant 0 : i32
    return %c0_i32, %c0_i32_0 : i32, i32
  }
  func.func @transform_6(%arg0: i32) -> (i32, i32) {
    %c0_i32 = arith.constant 0 : i32
    %c0_i32_0 = arith.constant 0 : i32
    %c0_i32_1 = arith.constant 0 : i32
    return %c0_i32, %c0_i32_0 : i32, i32
  }
  func.func @transform_7(%arg0: i32) -> (i32, i32) {
    %c0_i32 = arith.constant 0 : i32
    %c0_i32_0 = arith.constant 0 : i32
    return %arg0, %c0_i32 : i32, i32
  }
}

</mosaic_0001>

<llo_original>
// kernel: tpu_custom_call.1
$region0: #{tpu_custom_call.1}
  #allocation0 [shape = 'u32[]', space=smem, size = 0x4, offset = 0x4, fixed_abs, tag = 'smem constant byte address 0x4 - core index']
  #allocation1 [shape = 'u32[72,128]{1,0:T(1,128)}', space=vmem, size = 0x9000, scoped, tag = 'internal scratch']
  %s0 = inlined_call_operand.vmem [shape: f32[16,8], index: 0, kind: input, shape index: {}]
  %s1 = inlined_call_operand.vmem [shape: f32[4,32], index: 1, kind: input, shape index: {}]
  %s2 = inlined_call_operand.vmem [shape: f32[1,32], index: 2, kind: input, shape index: {}]
  %s3 = inlined_call_operand.vmem [shape: f32[32,32], index: 3, kind: input, shape index: {}]
  %s4 = inlined_call_operand.vmem [shape: f32[1,32], index: 4, kind: input, shape index: {}]
  %s5 = inlined_call_operand.vmem [shape: f32[32,7], index: 5, kind: input, shape index: {}]
  %s6 = inlined_call_operand.vmem [shape: f32[1,7], index: 6, kind: input, shape index: {}]
  %s7 = inlined_call_operand.vmem [shape: f32[16,8], index: 7, kind: output, shape index: {}]
  %s8 = sld [smem:[#allocation0]]
  $region38: #{tpu_custom_call.1} parent=0
    _
  %s10 = ssub.s32 1, %s8
  %s11 = scalar_select 0, %s10, %s8
  // Predicated region
  $region2: #{tpu_custom_call.1} parent=0 // pred_check
    _
  $region3: #{tpu_custom_call.1} parent=0 // pred_check_branch
    %13 = sbr.rel (0) target = $region5
  $region4: #{tpu_custom_call.1} parent=0 // pred_region
    _
  $region5: #{tpu_custom_call.1} parent=0 // pred_fallthru
    _
  // Predicated region
  $region6: #{tpu_custom_call.1} parent=0 // pred_check
    _
  $region7: #{tpu_custom_call.1} parent=0 // pred_check_branch
    %15 = sbr.rel (0) target = $region9
  $region8: #{tpu_custom_call.1} parent=0 // pred_region
    _
  $region9: #{tpu_custom_call.1} parent=0 // pred_fallthru
    _
  // Predicated region
  $region10: #{tpu_custom_call.1} parent=0 // pred_check
    _
  $region11: #{tpu_custom_call.1} parent=0 // pred_check_branch
    %17 = sbr.rel (0) target = $region13
  $region12: #{tpu_custom_call.1} parent=0 // pred_region
    _
  $region13: #{tpu_custom_call.1} parent=0 // pred_fallthru
    _
  // Predicated region
  $region14: #{tpu_custom_call.1} parent=0 // pred_check
    _
  $region15: #{tpu_custom_call.1} parent=0 // pred_check_branch
    %19 = sbr.rel (0) target = $region17
  $region16: #{tpu_custom_call.1} parent=0 // pred_region
    _
  $region17: #{tpu_custom_call.1} parent=0 // pred_fallthru
    _
  // Predicated region
  $region18: #{tpu_custom_call.1} parent=0 // pred_check
    _
  $region19: #{tpu_custom_call.1} parent=0 // pred_check_branch
    %21 = sbr.rel (0) target = $region21
  $region20: #{tpu_custom_call.1} parent=0 // pred_region
    _
  $region21: #{tpu_custom_call.1} parent=0 // pred_fallthru
    _
  // Predicated region
  $region22: #{tpu_custom_call.1} parent=0 // pred_check
    _
  $region23: #{tpu_custom_call.1} parent=0 // pred_check_branch
    %23 = sbr.rel (0) target = $region25
  $region24: #{tpu_custom_call.1} parent=0 // pred_region
    _
  $region25: #{tpu_custom_call.1} parent=0 // pred_fallthru
    _
  // Predicated region
  $region26: #{tpu_custom_call.1} parent=0 // pred_check
    _
  $region27: #{tpu_custom_call.1} parent=0 // pred_check_branch
    %25 = sbr.rel (0) target = $region29
  $region28: #{tpu_custom_call.1} parent=0 // pred_region
    _
  $region29: #{tpu_custom_call.1} parent=0 // pred_fallthru
    _
  %v26 = vld [vmem:[%s0] sm:$0xff]
  %v27 = vld [vmem:[%s0 + $0x8] sm:$0xff]
  %v28 = vld [vmem:[%s1] sm:$0xf]
  %v29 = vld [vmem:[%s2] sm:$0x1]
  %v31 = vperm.slane %v29, 0
  %vm33 = vcmask 31744
  %v35 = vsel %vm33, %v26, 0
  %v38 = vsel %vm33, %v27, 0
  %vm40 = vcmask 1043456
  %v42 = vsel %vm40, %v28, 0
  %44 = vmatpush.msra.mxu0 0.0
  %45 = vmatpush.msra.mxu0 0.0
  %46 = vmatpush.msra.mxu0 0.0
  %47 = vmatpush.msra.mxu0 0.0
  %48 = vmatpush.msra.mxu0 0.0
  %49 = vmatpush.msra.mxu0 0.0
  %50 = vmatpush.msra.mxu0 0.0
  %51 = vmatpush.msra.mxu0 0.0
  %52 = vmatpush.msra.mxu0 0.0
  %53 = vmatpush.msra.mxu0 0.0
  %54 = vmatpush.msra.mxu0 0.0
  %55 = vmatpush.msra.mxu0 0.0
  %56 = vmatpush.msra.mxu0 0.0
  %57 = vmatpush.msra.mxu0 0.0
  %58 = vmatpush.msra.mxu0 0.0
  %59 = vmatpush.msra.mxu0 %v42
  %60 = vmatmul.f32.gmra.mxu0 %v35
  %v61 = vpop.f32.mrf.mxu0
  %v62 = vadd.f32 %v31, %v61
  %63 = vmatmul.f32.gmra.mxu0 %v38
  %v64 = vpop.f32.mrf.mxu0
  %v65 = vadd.f32 %v31, %v64
  %66 = vdwg.mxu0
  %v67 = vmax.f32 %v62, 0.0
  %v68 = vmax.f32 %v65, 0.0
  %v69 = vld [vmem:[%s3] sm:$0xff]
  %v70 = vld [vmem:[%s3 + $0x8] sm:$0xff]
  %v71 = vld [vmem:[%s3 + $0x10] sm:$0xff]
  %v72 = vld [vmem:[%s3 + $0x18] sm:$0xff]
  %v73 = vld [vmem:[%s4] sm:$0x1]
  %v75 = vperm.slane %v73, 0
  %vm77 = vcmask 261120
  %v79 = vsel %vm77, %v67, 0
  %v82 = vsel %vm77, %v68, 0
  %84 = vmatpush.msra.mxu0 0.0
  %85 = vmatpush.msra.mxu0 0.0
  %86 = vmatpush.msra.mxu0 0.0
  %87 = vmatpush.msra.mxu0 0.0
  %88 = vmatpush.msra.mxu0 0.0
  %89 = vmatpush.msra.mxu0 0.0
  %90 = vmatpush.msra.mxu0 0.0
  %91 = vmatpush.msra.mxu0 0.0
  %92 = vmatpush.msra.mxu0 0.0
  %93 = vmatpush.msra.mxu0 0.0
  %94 = vmatpush.msra.mxu0 0.0
  %95 = vmatpush.msra.mxu0 0.0
  %96 = vmatpush.msra.mxu0 %v72
  %97 = vmatpush.msra.mxu0 %v71
  %98 = vmatpush.msra.mxu0 %v70
  %99 = vmatpush.msra.mxu0 %v69
  %100 = vmatmul.f32.gmra.mxu0 %v79
  %v101 = vpop.f32.mrf.mxu0
  %v102 = vadd.f32 %v75, %v101
  %103 = vmatmul.f32.gmra.mxu0 %v82
  %v104 = vpop.f32.mrf.mxu0
  %v105 = vadd.f32 %v75, %v104
  %106 = vdwg.mxu0
  %v107 = vmax.f32 %v102, 0.0
  %v108 = vmax.f32 %v105, 0.0
  %v109 = vld [vmem:[%s5] sm:$0xff]
  %v110 = vld [vmem:[%s5 + $0x8] sm:$0xff]
  %v111 = vld [vmem:[%s5 + $0x10] sm:$0xff]
  %v112 = vld [vmem:[%s5 + $0x18] sm:$0xff]
  %v113 = vld [vmem:[%s6] sm:$0x1]
  %v115 = vperm.slane %v113, 0
  %v118 = vsel %vm77, %v107, 0
  %v121 = vsel %vm77, %v108, 0
  %123 = vmatpush.msra.mxu0 0.0
  %124 = vmatpush.msra.mxu0 0.0
  %125 = vmatpush.msra.mxu0 0.0
  %126 = vmatpush.msra.mxu0 0.0
  %127 = vmatpush.msra.mxu0 0.0
  %128 = vmatpush.msra.mxu0 0.0
  %129 = vmatpush.msra.mxu0 0.0
  %130 = vmatpush.msra.mxu0 0.0
  %131 = vmatpush.msra.mxu0 0.0
  %132 = vmatpush.msra.mxu0 0.0
  %133 = vmatpush.msra.mxu0 0.0
  %134 = vmatpush.msra.mxu0 0.0
  %135 = vmatpush.msra.mxu0 %v112
  %136 = vmatpush.msra.mxu0 %v111
  %137 = vmatpush.msra.mxu0 %v110
  %138 = vmatpush.msra.mxu0 %v109
  %139 = vmatmul.f32.gmra.mxu0 %v118
  %v140 = vpop.f32.mrf.mxu0
  %v141 = vadd.f32 %v115, %v140
  %142 = vmatmul.f32.gmra.mxu0 %v121
  %v143 = vpop.f32.mrf.mxu0
  %v144 = vadd.f32 %v115, %v143
  %145 = vdwg.mxu0
  %v146 = vtanh.pop %v141
  %v147 = vtanh.pop %v144
  %v148 = vmul.f32 %v146, 0.1
  %v149 = vmul.f32 %v147, 0.1
  %vm150 = vcmask 23552
  %v151 = vsel %vm150, %v148, 0.0
  %152 = vadd.xlane.f32.xlu0 %v151
  %v153 = vpop.xlane.xlu0 %152
  %v154 = vsel %vm150, %v149, 0.0
  %155 = vadd.xlane.f32.xlu0 %v154
  %v156 = vpop.xlane.xlu0 %155
  %v157 = vsub.f32 0.0, %v153
  %v158 = vsub.f32 0.0, %v156
  %v159 = vsel %vm150, %v148, %v157
  %v160 = vsel %vm150, %v149, %v158
  %v161 = vmul.f32 %v159, 1.442695
  %v162 = vpow.pop %v161
  %v163 = vmul.f32 %v160, 1.442695
  %v164 = vpow.pop %v163
  %167 = vrot.lane.b32.xlu0 %v162, 4
  %v168 = vpop.permute.xlu0 %167
  %169 = vrot.lane.b32.xlu0 %v164, 4
  %v170 = vpop.permute.xlu0 %169
  %v173 = vmul.f32 %v26, %v168
  %v174 = vmul.f32 %v27, %v170
  %177 = vrot.lane.b32.xlu0 %v141, 1
  %v178 = vpop.permute.xlu0 %177
  %179 = vrot.lane.b32.xlu0 %v144, 1
  %v180 = vpop.permute.xlu0 %179
  %v183 = vadd.f32 %v173, %v178
  %v184 = vadd.f32 %v174, %v180
  %187 = vrot.lane.b32.xlu0 %v183, 124
  %v188 = vpop.permute.xlu0 %187
  %189 = vrot.lane.b32.xlu0 %v184, 124
  %v190 = vpop.permute.xlu0 %189
  %193 = vrot.lane.b32.xlu0 %v26, 4
  %v194 = vpop.permute.xlu0 %193
  %195 = vrot.lane.b32.xlu0 %v27, 4
  %v196 = vpop.permute.xlu0 %195
  %v199 = vsel %vm33, %v188, %v194
  %v200 = vsel %vm33, %v190, %v196
  %vm201 = vcmask 64512
  %202 = vst.msk [vmem:[%s7] sm:$0xff] %vm201, %v199
  %203 = vst.msk [vmem:[%s7 + $0x8] sm:$0xff] %vm201, %v200
  // Predicated region
  $region30: #{tpu_custom_call.1} parent=0 // pred_check
    _
  $region31: #{tpu_custom_call.1} parent=0 // pred_check_branch
    %205 = sbr.rel (0) target = $region33
  $region32: #{tpu_custom_call.1} parent=0 // pred_region
    _
  $region33: #{tpu_custom_call.1} parent=0 // pred_fallthru
    _
  // Predicated region
  $region34: #{tpu_custom_call.1} parent=0 // pred_check
    _
  $region35: #{tpu_custom_call.1} parent=0 // pred_check_branch
    %207 = sbr.rel (0) target = $region37
  $region36: #{tpu_custom_call.1} parent=0 // pred_region
    _
  $region37: #{tpu_custom_call.1} parent=0 // pred_fallthru
    _

</llo_original>
